<compile_context>
chip_gen: v7x
topology: tpu7x:2x2x1
jax: 0.10.0
libtpu: 0.0.40
codegen_flags: <defaults>
</compile_context>

<pallas_src>
import jax
import jax.numpy as jnp
from jax.experimental import pallas as pl
from jax.experimental.pallas import tpu as pltpu

# ---------------------------------------------------------------------------
# Model hyper-parameters (small synthetic RetinaFace)
# ---------------------------------------------------------------------------
N, CIN, H, W = 2, 4, 16, 16     # input (NCHW) = (2, 4, 16, 16)
CFEAT = 32                      # backbone stem output channels
A = 2                           # anchors per location
KH = KW = 3                     # stem conv kernel
M = N * H * W                   # flattened spatial rows (512)
K = KH * KW * CIN               # im2col feature width (36)
K_PAD = 128                     # lane-aligned im2col width
OUT_W = 128                     # lane-dense output slab width
TM = 256                        # rows per grid step -> grid=(2,) (both v7x TCs)

# Lane layout of the fused head / output slab.
BBOX_LO, BBOX_HI = 0, A * 4                 # 0:8   raw bbox regressions
CLS_LO, CLS_HI = BBOX_HI, BBOX_HI + 2 * A   # 8:12  per-anchor class-logit DIFFERENCES
LDM_LO, LDM_HI = CLS_HI, CLS_HI + A * 10    # 12:32 raw landmark regressions
HEAD_W = LDM_HI                             # 32 meaningful lanes, rest zero pad


# ---------------------------------------------------------------------------
# Pallas kernel: stem conv (im2col matmul) + ReLU + fused heads + class sigmoid
# ---------------------------------------------------------------------------
def retinaface_kernel(patch_ref, ws_ref, bs_ref, wh_ref, bh_ref, out_ref):
    # Stem: 3x3 conv as one im2col matmul (bf16 operands, f32 accumulate) + ReLU.
    feat = jnp.dot(patch_ref[...], ws_ref[...],
                   preferred_element_type=jnp.float32)
    feat = jnp.maximum(feat + bs_ref[...], 0.0)                      # (TM, CFEAT) f32

    # All four detection heads fused into ONE matmul producing a lane-dense
    # 128-wide slab (columns >= 32 have zero weights and bias).
    head = jnp.dot(feat.astype(jnp.bfloat16), wh_ref[...],
                   preferred_element_type=jnp.float32) + bh_ref[...]  # (TM, 128) f32

    # Class lanes already hold the per-anchor logit difference (folded into the
    # packed weights), so the exact 2-class softmax is a full-width elementwise
    # sigmoid (EUP) selected by a lane mask — no cross-lane movement, no narrow
    # slices, and a single unmasked 128-lane store.
    lane = jax.lax.broadcasted_iota(jnp.int32, head.shape, 1)
    is_cls = (lane >= CLS_LO) & (lane < CLS_HI)
    prob = 1.0 / (1.0 + jnp.exp(-head))
    out_ref[...] = jnp.where(is_cls, prob, head)


# ---------------------------------------------------------------------------
# Host-side helpers
# ---------------------------------------------------------------------------
def im2col(x_nchw):
    """3x3 SAME-conv im2col: (N, CIN, H, W) -> (N*H*W, K) f32, rows in (n,h,w) order."""
    n, c, h, w = x_nchw.shape
    p = jax.lax.conv_general_dilated_patches(
        x_nchw, filter_shape=(KH, KW), window_strides=(1, 1), padding="SAME",
        dimension_numbers=("NCHW", "OIHW", "NHWC"))          # (N, H, W, C*KH*KW)
    return p.reshape(n * h * w, c * KH * KW)


def pack_params(p):
    """Fuse the four head convs into one (CFEAT, 128) matmul with lane-dense layout.

    softmax([l0, l1]) == [sigmoid(l0 - l1), sigmoid(l1 - l0)], so the class lanes
    carry the logit-difference weights, interleaved per anchor as
    [a0_c0, a0_c1, a1_c0, a1_c1] at lanes 8:12.
    """
    # Pre-round the class weights to bf16 so the folded difference matches the
    # reference's separate-logit bf16 path as closely as possible.
    w0 = p["w_cls0"].astype(jnp.bfloat16).astype(jnp.float32)
    w1 = p["w_cls1"].astype(jnp.bfloat16).astype(jnp.float32)
    wd = w0 - w1                                             # (CFEAT, A)
    bd = p["b_cls0"] - p["b_cls1"]                           # (1, A)
    w_cls = jnp.stack([wd, -wd], axis=-1).reshape(CFEAT, 2 * A)
    b_cls = jnp.stack([bd, -bd], axis=-1).reshape(1, 2 * A)

    wh = jnp.concatenate([p["w_bbox"], w_cls, p["w_ldm"]], axis=1)       # (CFEAT, 32)
    bh = jnp.concatenate([p["b_bbox"], b_cls, p["b_ldm"]], axis=1)       # (1, 32)
    wh = jnp.pad(wh, ((0, 0), (0, OUT_W - HEAD_W))).astype(jnp.bfloat16)  # (CFEAT, 128)
    bh = jnp.pad(bh, ((0, 0), (0, OUT_W - HEAD_W)))                       # (1, 128) f32
    ws = jnp.pad(p["w_stem"], ((0, K_PAD - K), (0, 0))).astype(jnp.bfloat16)  # (128, CFEAT)
    return {"w_stem": ws, "b_stem": p["b_stem"], "w_head": wh, "b_head": bh}


@jax.jit
def quant_retinaface_forward(x_nchw, packed):
    """Forward pass of QuantRetinaFace.  Input: NCHW float32."""
    # QuantStub / DeQuantStub: identity in fp32 eager mode.
    n, _, h, w = x_nchw.shape

    # One fused patch-extraction op; fold K-pad and bf16 cast in.
    patches = im2col(x_nchw)
    patches = jnp.pad(patches, ((0, 0), (0, K_PAD - K))).astype(jnp.bfloat16)

    slab = pl.pallas_call(
        retinaface_kernel,
        out_shape=jax.ShapeDtypeStruct((M, OUT_W), jnp.float32),
        grid=(M // TM,),
        in_specs=[
            pl.BlockSpec((TM, K_PAD), lambda i: (i, 0)),
            pl.BlockSpec((K_PAD, CFEAT), lambda i: (0, 0)),
            pl.BlockSpec((1, CFEAT), lambda i: (0, 0)),
            pl.BlockSpec((CFEAT, OUT_W), lambda i: (0, 0)),
            pl.BlockSpec((1, OUT_W), lambda i: (0, 0)),
        ],
        out_specs=pl.BlockSpec((TM, OUT_W), lambda i: (i, 0)),
        compiler_params=pltpu.CompilerParams(
            dimension_semantics=("parallel",)),
    )(patches, packed["w_stem"], packed["b_stem"],
      packed["w_head"], packed["b_head"])

    # Post-processing is contiguous slices + reshapes only.
    bbox = slab[:, BBOX_LO:BBOX_HI].reshape(n, h * w * A, 4)
    prob = slab[:, CLS_LO:CLS_HI].reshape(n, h * w * A, 2)
    landmark = slab[:, LDM_LO:LDM_HI].reshape(n, h * w * A, 10)

    # DeQuantStub: identity.
    return {"bbox": bbox, "prob": prob, "landmark": landmark}


# ---------------------------------------------------------------------------
# Deterministic synthetic parameters
# ---------------------------------------------------------------------------
def make_params(key):
    ks = jax.random.split(key, 10)
    s = 0.1
    return {
        "w_stem": s * jax.random.normal(ks[0], (K, CFEAT), jnp.float32),
        "b_stem": s * jax.random.normal(ks[1], (1, CFEAT), jnp.float32),
        "w_bbox": s * jax.random.normal(ks[2], (CFEAT, A * 4), jnp.float32),
        "b_bbox": s * jax.random.normal(ks[3], (1, A * 4), jnp.float32),
        # Per-anchor class-0 / class-1 columns of the class head.
        "w_cls0": s * jax.random.normal(ks[4], (CFEAT, A), jnp.float32),
        "b_cls0": s * jax.random.normal(ks[5], (1, A), jnp.float32),
        "w_cls1": s * jax.random.normal(ks[6], (CFEAT, A), jnp.float32),
        "b_cls1": s * jax.random.normal(ks[7], (1, A), jnp.float32),
        "w_ldm": s * jax.random.normal(ks[8], (CFEAT, A * 10), jnp.float32),
        "b_ldm": s * jax.random.normal(ks[9], (1, A * 10), jnp.float32),
    }


# ---------------------------------------------------------------------------
# Pure-JAX reference (standard per-head formulation, bf16 operands, f32 accum)
# ---------------------------------------------------------------------------
def reference_forward(x_nchw, p):
    n, _, h, w = x_nchw.shape
    patches = im2col(x_nchw).astype(jnp.bfloat16)
    feat = jnp.maximum(
        jnp.dot(patches, p["w_stem"].astype(jnp.bfloat16),
                preferred_element_type=jnp.float32) + p["b_stem"], 0.0)
    featb = feat.astype(jnp.bfloat16)

    def head(wn, bn):
        return jnp.dot(featb, p[wn].astype(jnp.bfloat16),
                       preferred_element_type=jnp.float32) + p[bn]

    bbox = head("w_bbox", "b_bbox")
    l0 = head("w_cls0", "b_cls0")
    l1 = head("w_cls1", "b_cls1")
    prob = jax.nn.softmax(jnp.stack([l0, l1], axis=-1), axis=-1)
    ldm = head("w_ldm", "b_ldm")
    return {
        "bbox": bbox.reshape(n, h * w * A, 4),
        "prob": prob.reshape(n, h * w * A, 2),
        "landmark": ldm.reshape(n, h * w * A, 10),
    }


if __name__ == "__main__":
    key = jax.random.PRNGKey(0)
    k_x, k_p = jax.random.split(key)
    x = jax.random.normal(k_x, (N, CIN, H, W), jnp.float32)   # NCHW, like PyTorch
    params = make_params(k_p)
    packed = pack_params(params)

    out = quant_retinaface_forward(x, packed)
    out = jax.tree_util.tree_map(jax.block_until_ready, out)

    assert out["bbox"].shape == (N, H * W * A, 4)
    assert out["prob"].shape == (N, H * W * A, 2)
    assert out["landmark"].shape == (N, H * W * A, 10)

    ref = reference_forward(x, params)
    # bbox / landmark share the exact bf16-operand math with the reference.
    # prob folds (w_cls0 - w_cls1) into a single bf16 weight column, which adds
    # one bf16 rounding step relative to the reference's separate-logit path,
    # hence the slightly wider (still sub-0.2%) probability tolerance.
    tol = {"bbox": 1e-3, "prob": 2e-3, "landmark": 1e-3}
    for name in ("bbox", "prob", "landmark"):
        assert jnp.allclose(out[name], ref[name], atol=tol[name], rtol=1e-3), name
    # Exact per-anchor normalization (no approximate reciprocal anymore).
    assert jnp.allclose(out["prob"].sum(-1), 1.0, atol=1e-5)

    print("KERNEL_OK")
</pallas_src>

<mosaic_0001>
module attributes {stable_mosaic.version = 11 : i64} {
  func.func @retinaface_kernel(%arg0: i32, %arg1: memref<256x128xbf16, #tpu.memory_space<vmem>>, %arg2: memref<128x32xbf16, #tpu.memory_space<vmem>>, %arg3: memref<1x32xf32, #tpu.memory_space<vmem>>, %arg4: memref<32x128xbf16, #tpu.memory_space<vmem>>, %arg5: memref<1x128xf32, #tpu.memory_space<vmem>>, %arg6: memref<256x128xf32, #tpu.memory_space<vmem>>) attributes {dimension_semantics = [#tpu.dimension_semantics<parallel>], iteration_bounds = array<i64: 2>, scalar_prefetch = 0 : i64, scratch_operands = 0 : i64, tpu.core_type = #tpu.core_type<tc>, window_params = [{transform_indices = @transform_0, window_bounds = array<i64: 256, 128>}, {pipeline_mode = #tpu.pipeline_mode<synchronous>, transform_indices = @transform_1, window_bounds = array<i64: 128, 32>}, {pipeline_mode = #tpu.pipeline_mode<synchronous>, transform_indices = @transform_2, window_bounds = array<i64: 1, 32>}, {pipeline_mode = #tpu.pipeline_mode<synchronous>, transform_indices = @transform_3, window_bounds = array<i64: 32, 128>}, {pipeline_mode = #tpu.pipeline_mode<synchronous>, transform_indices = @transform_4, window_bounds = array<i64: 1, 128>}, {transform_indices = @transform_5, window_bounds = array<i64: 256, 128>}]} {
    %c0 = arith.constant 0 : index
    %c0_0 = arith.constant 0 : index
    %0 = vector.load %arg1[%c0, %c0_0] : memref<256x128xbf16, #tpu.memory_space<vmem>>, vector<256x128xbf16>
    %c0_1 = arith.constant 0 : index
    %c0_2 = arith.constant 0 : index
    %1 = vector.load %arg2[%c0_1, %c0_2] : memref<128x32xbf16, #tpu.memory_space<vmem>>, vector<128x32xbf16>
    %cst = arith.constant dense<0.000000e+00> : vector<256x32xf32>
    %2 = tpu.matmul %0, %1, %cst {dimension_numbers = #tpu.dot_dimension_numbers<[1], [0], [0], [1], [0, 0, 1, 1], [], []>} : vector<256x128xbf16>, vector<128x32xbf16>, vector<256x32xf32> -> vector<256x32xf32>
    %c0_3 = arith.constant 0 : index
    %c0_4 = arith.constant 0 : index
    %3 = vector.load %arg3[%c0_3, %c0_4] : memref<1x32xf32, #tpu.memory_space<vmem>>, vector<1x32xf32>
    %4 = vector.broadcast %3 : vector<1x32xf32> to vector<256x32xf32>
    %5 = arith.addf %2, %4 : vector<256x32xf32>
    %cst_5 = arith.constant 0.000000e+00 : f32
    %6 = vector.broadcast %cst_5 : f32 to vector<256x32xf32>
    %7 = arith.maximumf %5, %6 : vector<256x32xf32>
    %8 = arith.truncf %7 : vector<256x32xf32> to vector<256x32xbf16>
    %c0_6 = arith.constant 0 : index
    %c0_7 = arith.constant 0 : index
    %9 = vector.load %arg4[%c0_6, %c0_7] : memref<32x128xbf16, #tpu.memory_space<vmem>>, vector<32x128xbf16>
    %cst_8 = arith.constant dense<0.000000e+00> : vector<256x128xf32>
    %10 = tpu.matmul %8, %9, %cst_8 {dimension_numbers = #tpu.dot_dimension_numbers<[1], [0], [0], [1], [0, 0, 1, 1], [], []>} : vector<256x32xbf16>, vector<32x128xbf16>, vector<256x128xf32> -> vector<256x128xf32>
    %c0_9 = arith.constant 0 : index
    %c0_10 = arith.constant 0 : index
    %11 = vector.load %arg5[%c0_9, %c0_10] : memref<1x128xf32, #tpu.memory_space<vmem>>, vector<1x128xf32>
    %12 = vector.broadcast %11 : vector<1x128xf32> to vector<256x128xf32>
    %13 = arith.addf %10, %12 : vector<256x128xf32>
    %14 = tpu.iota {dimensions = array<i32: 1>} : vector<256x128xi32>
    %c8_i32 = arith.constant 8 : i32
    %15 = vector.broadcast %c8_i32 : i32 to vector<256x128xi32>
    %16 = arith.cmpi sge, %14, %15 : vector<256x128xi32>
    %c12_i32 = arith.constant 12 : i32
    %17 = vector.broadcast %c12_i32 : i32 to vector<256x128xi32>
    %18 = arith.cmpi slt, %14, %17 : vector<256x128xi32>
    %19 = arith.andi %16, %18 : vector<256x128xi1>
    %cst_11 = arith.constant 0.000000e+00 : f32
    %20 = vector.broadcast %cst_11 : f32 to vector<256x128xf32>
    %21 = arith.subf %20, %13 : vector<256x128xf32>
    %22 = math.exp %21 : vector<256x128xf32>
    %cst_12 = arith.constant 1.000000e+00 : f32
    %23 = vector.broadcast %cst_12 : f32 to vector<256x128xf32>
    %24 = arith.addf %23, %22 : vector<256x128xf32>
    %cst_13 = arith.constant 1.000000e+00 : f32
    %25 = vector.broadcast %cst_13 : f32 to vector<256x128xf32>
    %26 = arith.divf %25, %24 : vector<256x128xf32>
    %27 = arith.select %19, %26, %13 : vector<256x128xi1>, vector<256x128xf32>
    %c0_14 = arith.constant 0 : index
    %c0_15 = arith.constant 0 : index
    %28 = vector.load %arg6[%c0_14, %c0_15] : memref<256x128xf32, #tpu.memory_space<vmem>>, vector<256x128xf32>
    tpu.vector_store %arg6[%c0_14, %c0_15], %27 {strides = array<i32>} : memref<256x128xf32, #tpu.memory_space<vmem>>, vector<256x128xf32>,
    return
  }
  func.func @transform_0(%arg0: i32) -> (i32, i32) {
    %c0_i32 = arith.constant 0 : i32
    %c0_i32_0 = arith.constant 0 : i32
    return %arg0, %c0_i32 : i32, i32
  }
  func.func @transform_1(%arg0: i32) -> (i32, i32) {
    %c0_i32 = arith.constant 0 : i32
    %c0_i32_0 = arith.constant 0 : i32
    %c0_i32_1 = arith.constant 0 : i32
    return %c0_i32, %c0_i32_0 : i32, i32
  }
  func.func @transform_2(%arg0: i32) -> (i32, i32) {
    %c0_i32 = arith.constant 0 : i32
    %c0_i32_0 = arith.constant 0 : i32
    %c0_i32_1 = arith.constant 0 : i32
    return %c0_i32, %c0_i32_0 : i32, i32
  }
  func.func @transform_3(%arg0: i32) -> (i32, i32) {
    %c0_i32 = arith.constant 0 : i32
    %c0_i32_0 = arith.constant 0 : i32
    %c0_i32_1 = arith.constant 0 : i32
    return %c0_i32, %c0_i32_0 : i32, i32
  }
  func.func @transform_4(%arg0: i32) -> (i32, i32) {
    %c0_i32 = arith.constant 0 : i32
    %c0_i32_0 = arith.constant 0 : i32
    %c0_i32_1 = arith.constant 0 : i32
    return %c0_i32, %c0_i32_0 : i32, i32
  }
  func.func @transform_5(%arg0: i32) -> (i32, i32) {
    %c0_i32 = arith.constant 0 : i32
    %c0_i32_0 = arith.constant 0 : i32
    return %arg0, %c0_i32 : i32, i32
  }
}

</mosaic_0001>

<llo_original>
// kernel: quant_retinaface_forward.1
$region0: #{quant_retinaface_forward.1}
  #allocation0 [shape = 'u32[]', space=smem, size = 0x4, offset = 0x4, fixed_abs, tag = 'smem constant byte address 0x4 - core index']
  #allocation1 [shape = 'u32[144,128]{1,0:T(1,128)}', space=vmem, size = 0x12000, scoped, tag = 'internal scratch']
  %s0 = inlined_call_operand.vmem [shape: bf16[512,128], index: 0, kind: input, shape index: {}]
  %s1 = inlined_call_operand.vmem [shape: bf16[128,32], index: 1, kind: input, shape index: {}]
  %s2 = inlined_call_operand.vmem [shape: f32[1,32], index: 2, kind: input, shape index: {}]
  %s3 = inlined_call_operand.vmem [shape: bf16[32,128], index: 3, kind: input, shape index: {}]
  %s4 = inlined_call_operand.vmem [shape: f32[1,128], index: 4, kind: input, shape index: {}]
  %s5 = inlined_call_operand.vmem [shape: f32[512,128], index: 5, kind: output, shape index: {}]
  %s6 = sld [smem:[#allocation0]]
  $region53: #{quant_retinaface_forward.1} parent=0
    _
  %s8 = ssub.s32 1, %s6
  %s9 = scalar_select 0, %s8, %s6
  loop: start=0, step=1, limit=4
  $region2: #{quant_retinaface_forward.1} parent=0 // loop_pre_header
    _
  $region3: #{quant_retinaface_forward.1} parent=0 // loop_header
    %s11 = sphi 0, %s15
    %p12 = scmp.ge.s32.totalorder %s11, 4
    %s21 = sphi 0, %s23
    %s24 = sphi 0, %s21
    %s25 = sphi 0, %s24
    %s41 = sphi 0, %s25
    %s45 = sphi 0, %s45
    %s47 = sphi 0, %s45
    %s48 = sphi 0, %s47
    %s62 = sphi 0, %s48
    %s66 = sphi 0, %s66
    %s68 = sphi 0, %s66
    %s69 = sphi 0, %s68
    %s83 = sphi 0, %s69
    %s87 = sphi 0, %s87
    %s89 = sphi 0, %s87
    %s90 = sphi 0, %s89
    %s104 = sphi 0, %s90
    %s108 = sphi 0, %s108
    %s110 = sphi 0, %s108
    %s111 = sphi 0, %s110
    %s125 = sphi 0, %s111
    %s131 = sphi 0, %s133
    %s134 = sphi 0, %s131
    %s135 = sphi 0, %s134
    %s151 = sphi 0, %s135
  $region4: #{quant_retinaface_forward.1} parent=0 // loop_header_branch
    %14 = sbr.rel (%p12) target = $region8
  $region5: #{quant_retinaface_forward.1} parent=0 // loop_body
    %s16 = ssub.s32 %s11, 1
    %s17 = ssub.s32 %s11, 2
    %s18 = sadd.s32 %s11, 1
    %s19 = ssub.s32 %s11, %s18
    %p20 = scmp.eq.s32.totalorder %s19, 0
    %s22 = sadd.s32 %s21, 1
    %s23 = scalar_select %p20, %s21, %s22
    %p26 = pneg %p20
    %p27 = scmp.eq.s32.totalorder %s11, 1
    %p28 = por %p26, %p27
    %p29 = scmp.ne.s32.totalorder %s21, %s24
    %p30 = scmp.eq.s32.totalorder %s11, 0
    %p31 = por %p29, %p30
    %p32 = scmp.ne.s32.totalorder %s21, %s24
    %p33 = scmp.eq.s32.totalorder %s16, 1
    %p34 = por %p32, %p33
    %p35 = scmp.ne.s32.totalorder %s24, %s25
    %p36 = scmp.eq.s32.totalorder %s16, 0
    %p37 = por %p35, %p36
    %p38 = scmp.ne.s32.totalorder %s24, %s25
    %p39 = scmp.eq.s32.totalorder %s17, 1
    %p40 = por %p38, %p39
    %p42 = scmp.ne.s32.totalorder %s25, %s41
    %p43 = scmp.eq.s32.totalorder %s17, 0
    %p44 = por %p42, %p43
    %s46 = sadd.s32 %s45, 1
    %p49 = scmp.eq.s32.totalorder %s11, 1
    %p50 = scmp.ne.s32.totalorder %s45, %s47
    %p51 = scmp.eq.s32.totalorder %s11, 0
    %p52 = por %p50, %p51
    %p53 = scmp.ne.s32.totalorder %s45, %s47
    %p54 = scmp.eq.s32.totalorder %s16, 1
    %p55 = por %p53, %p54
    %p56 = scmp.ne.s32.totalorder %s47, %s48
    %p57 = scmp.eq.s32.totalorder %s16, 0
    %p58 = por %p56, %p57
    %p59 = scmp.ne.s32.totalorder %s47, %s48
    %p60 = scmp.eq.s32.totalorder %s17, 1
    %p61 = por %p59, %p60
    %p63 = scmp.ne.s32.totalorder %s48, %s62
    %p64 = scmp.eq.s32.totalorder %s17, 0
    %p65 = por %p63, %p64
    %s67 = sadd.s32 %s66, 1
    %p70 = scmp.eq.s32.totalorder %s11, 1
    %p71 = scmp.ne.s32.totalorder %s66, %s68
    %p72 = scmp.eq.s32.totalorder %s11, 0
    %p73 = por %p71, %p72
    %p74 = scmp.ne.s32.totalorder %s66, %s68
    %p75 = scmp.eq.s32.totalorder %s16, 1
    %p76 = por %p74, %p75
    %p77 = scmp.ne.s32.totalorder %s68, %s69
    %p78 = scmp.eq.s32.totalorder %s16, 0
    %p79 = por %p77, %p78
    %p80 = scmp.ne.s32.totalorder %s68, %s69
    %p81 = scmp.eq.s32.totalorder %s17, 1
    %p82 = por %p80, %p81
    %p84 = scmp.ne.s32.totalorder %s69, %s83
    %p85 = scmp.eq.s32.totalorder %s17, 0
    %p86 = por %p84, %p85
    %s88 = sadd.s32 %s87, 1
    %p91 = scmp.eq.s32.totalorder %s11, 1
    %p92 = scmp.ne.s32.totalorder %s87, %s89
    %p93 = scmp.eq.s32.totalorder %s11, 0
    %p94 = por %p92, %p93
    %p95 = scmp.ne.s32.totalorder %s87, %s89
    %p96 = scmp.eq.s32.totalorder %s16, 1
    %p97 = por %p95, %p96
    %p98 = scmp.ne.s32.totalorder %s89, %s90
    %p99 = scmp.eq.s32.totalorder %s16, 0
    %p100 = por %p98, %p99
    %p101 = scmp.ne.s32.totalorder %s89, %s90
    %p102 = scmp.eq.s32.totalorder %s17, 1
    %p103 = por %p101, %p102
    %p105 = scmp.ne.s32.totalorder %s90, %s104
    %p106 = scmp.eq.s32.totalorder %s17, 0
    %p107 = por %p105, %p106
    %s109 = sadd.s32 %s108, 1
    %p112 = scmp.eq.s32.totalorder %s11, 1
    %p113 = scmp.ne.s32.totalorder %s108, %s110
    %p114 = scmp.eq.s32.totalorder %s11, 0
    %p115 = por %p113, %p114
    %p116 = scmp.ne.s32.totalorder %s108, %s110
    %p117 = scmp.eq.s32.totalorder %s16, 1
    %p118 = por %p116, %p117
    %p119 = scmp.ne.s32.totalorder %s110, %s111
    %p120 = scmp.eq.s32.totalorder %s16, 0
    %p121 = por %p119, %p120
    %p122 = scmp.ne.s32.totalorder %s110, %s111
    %p123 = scmp.eq.s32.totalorder %s17, 1
    %p124 = por %p122, %p123
    %p126 = scmp.ne.s32.totalorder %s111, %s125
    %p127 = scmp.eq.s32.totalorder %s17, 0
    %p128 = por %p126, %p127
    %s129 = ssub.s32 %s11, %s18
    %p130 = scmp.eq.s32.totalorder %s129, 0
    %s132 = sadd.s32 %s131, 1
    %s133 = scalar_select %p130, %s131, %s132
    %p136 = pneg %p130
    %p137 = scmp.eq.s32.totalorder %s11, 1
    %p138 = por %p136, %p137
    %p139 = scmp.ne.s32.totalorder %s131, %s134
    %p140 = scmp.eq.s32.totalorder %s11, 0
    %p141 = por %p139, %p140
    %p142 = scmp.ne.s32.totalorder %s131, %s134
    %p143 = scmp.eq.s32.totalorder %s16, 1
    %p144 = por %p142, %p143
    %p145 = scmp.ne.s32.totalorder %s134, %s135
    %p146 = scmp.eq.s32.totalorder %s16, 0
    %p147 = por %p145, %p146
    %p148 = scmp.ne.s32.totalorder %s134, %s135
    %p149 = scmp.eq.s32.totalorder %s17, 1
    %p150 = por %p148, %p149
    %p152 = scmp.ne.s32.totalorder %s135, %s151
    %p153 = scmp.eq.s32.totalorder %s17, 0
    %p154 = por %p152, %p153
    %p155 = scmp.le.s32.totalorder 1, %s11
    %p156 = scmp.lt.s32.totalorder %s11, 3
    %p157 = pnand %p155, %p156
    %p158 = pneg %p157
    // Predicated region
    $region9: #{quant_retinaface_forward.1} parent=5 // pred_check
      _
    $region10: #{quant_retinaface_forward.1} parent=5 // pred_check_branch
      %160 = sbr.rel (%p157) target = $region12
    $region11: #{quant_retinaface_forward.1} parent=5 // pred_region
      %s161 = ssub.s32 %s11, 1
      // Predicated region
      $region13: #{quant_retinaface_forward.1} parent=11 // pred_check
        %p162 = pneg %p58
      $region14: #{quant_retinaface_forward.1} parent=11 // pred_check_branch
        %164 = sbr.rel (%p162) target = $region16
      $region15: #{quant_retinaface_forward.1} parent=11 // pred_region
        _
      $region16: #{quant_retinaface_forward.1} parent=11 // pred_fallthru
        _
      // Predicated region
      $region17: #{quant_retinaface_forward.1} parent=11 // pred_check
        %p165 = pneg %p79
      $region18: #{quant_retinaface_forward.1} parent=11 // pred_check_branch
        %167 = sbr.rel (%p165) target = $region20
      $region19: #{quant_retinaface_forward.1} parent=11 // pred_region
        _
      $region20: #{quant_retinaface_forward.1} parent=11 // pred_fallthru
        _
      // Predicated region
      $region21: #{quant_retinaface_forward.1} parent=11 // pred_check
        %p168 = pneg %p100
      $region22: #{quant_retinaface_forward.1} parent=11 // pred_check_branch
        %170 = sbr.rel (%p168) target = $region24
      $region23: #{quant_retinaface_forward.1} parent=11 // pred_region
        _
      $region24: #{quant_retinaface_forward.1} parent=11 // pred_fallthru
        _
      // Predicated region
      $region25: #{quant_retinaface_forward.1} parent=11 // pred_check
        %p171 = pneg %p121
      $region26: #{quant_retinaface_forward.1} parent=11 // pred_check_branch
        %173 = sbr.rel (%p171) target = $region28
      $region27: #{quant_retinaface_forward.1} parent=11 // pred_region
        _
      $region28: #{quant_retinaface_forward.1} parent=11 // pred_fallthru
        _
    $region12: #{quant_retinaface_forward.1} parent=5 // pred_fallthru
      _
    %p174 = scmp.lt.s32.totalorder %s11, 2
    // Predicated region
    $region29: #{quant_retinaface_forward.1} parent=5 // pred_check
      %p175 = pneg %p174
    $region30: #{quant_retinaface_forward.1} parent=5 // pred_check_branch
      %177 = sbr.rel (%p175) target = $region32
    $region31: #{quant_retinaface_forward.1} parent=5 // pred_region
      // Predicated region
      $region33: #{quant_retinaface_forward.1} parent=31 // pred_check
        %p178 = pneg %p31
      $region34: #{quant_retinaface_forward.1} parent=31 // pred_check_branch
        %180 = sbr.rel (%p178) target = $region36
      $region35: #{quant_retinaface_forward.1} parent=31 // pred_region
        %s181 = smul.u32 32, %s11
        %p182 = scmp.lt.s32.totalorder %s181, 63
        %s183 = scalar_select %p182, %s181, 63
        %s184 = smul.addr %s183, 4
        %s185 = scalar_lea.vmem %s0, %s184
        %s186 = smul.u32 32, %s11
      $region36: #{quant_retinaface_forward.1} parent=31 // pred_fallthru
        _
    $region32: #{quant_retinaface_forward.1} parent=5 // pred_fallthru
      _
    %p187 = scmp.le.s32.totalorder 1, %s11
    %p188 = scmp.lt.s32.totalorder %s11, 3
    %p189 = pnand %p187, %p188
    %p190 = pneg %p189
    // Predicated region
    $region37: #{quant_retinaface_forward.1} parent=5 // pred_check
      _
    $region38: #{quant_retinaface_forward.1} parent=5 // pred_check_branch
      %192 = sbr.rel (%p189) target = $region40
    $region39: #{quant_retinaface_forward.1} parent=5 // pred_region
      %s193 = ssub.s32 %s11, 1
      %s194 = smul.u32 32, %s16
      %p195 = scmp.lt.s32.totalorder %s194, 63
      %s196 = scalar_select %p195, %s194, 63
      %s197 = smul.addr %s196, 4
      %s198 = scalar_lea.vmem %s0, %s197
      %p199 = pneg %p37
      %p200 = pneg %p34
      %p201 = pneg %p58
      %p202 = pneg %p55
      %p203 = pneg %p79
      %p204 = pneg %p76
      %p205 = pneg %p100
      %p206 = pneg %p97
      %p207 = pneg %p121
      %p208 = pneg %p118
      %p209 = pneg %p147
      %p210 = pneg %p144
      %s211 = smul.u32 32, %s16
      %p212 = scmp.lt.s32.totalorder %s211, 63
      %s213 = scalar_select %p212, %s211, 63
      %s214 = smul.addr %s213, 8
      %s215 = scalar_lea.vmem %s5, %s214
      %s216 = smul.u32 32, %s16
      %p217 = scmp.lt.s32.totalorder %s216, 63
      %s218 = scalar_select %p217, %s216, 63
      %s219 = smul.addr %s218, 4
      %s220 = scalar_lea.vmem %s0, %s219
      %s221 = smul.u32 32, %s16
      %s222 = smul.u32 32, %s16
      %p223 = scmp.lt.s32.totalorder %s222, 63
      %s224 = scalar_select %p223, %s222, 63
      %s225 = smul.addr %s224, 8
      %s226 = scalar_lea.vmem %s5, %s225
      %s227 = smul.u32 32, %s16
      %v229 = vld [vmem:[%s220] sm:$0xf]
      %v230 = vld [vmem:[%s220 + $0x4] sm:$0xf]
      %v231 = vld [vmem:[%s220 + $0x8] sm:$0xf]
      %v232 = vld [vmem:[%s220 + $0xc] sm:$0xf]
      %v233 = vld [vmem:[%s220 + $0x10] sm:$0xf]
      %v234 = vld [vmem:[%s220 + $0x14] sm:$0xf]
      %v235 = vld [vmem:[%s220 + $0x18] sm:$0xf]
      %v236 = vld [vmem:[%s220 + $0x1c] sm:$0xf]
      %v237 = vld [vmem:[%s220 + $0x20] sm:$0xf]
      %v238 = vld [vmem:[%s220 + $0x24] sm:$0xf]
      %v239 = vld [vmem:[%s220 + $0x28] sm:$0xf]
      %v240 = vld [vmem:[%s220 + $0x2c] sm:$0xf]
      %v241 = vld [vmem:[%s220 + $0x30] sm:$0xf]
      %v242 = vld [vmem:[%s220 + $0x34] sm:$0xf]
      %v243 = vld [vmem:[%s220 + $0x38] sm:$0xf]
      %v244 = vld [vmem:[%s220 + $0x3c] sm:$0xf]
      %v245 = vld [vmem:[%s220 + $0x40] sm:$0xf]
      %v246 = vld [vmem:[%s220 + $0x44] sm:$0xf]
      %v247 = vld [vmem:[%s220 + $0x48] sm:$0xf]
      %v248 = vld [vmem:[%s220 + $0x4c] sm:$0xf]
      %v249 = vld [vmem:[%s220 + $0x50] sm:$0xf]
      %v250 = vld [vmem:[%s220 + $0x54] sm:$0xf]
      %v251 = vld [vmem:[%s220 + $0x58] sm:$0xf]
      %v252 = vld [vmem:[%s220 + $0x5c] sm:$0xf]
      %v253 = vld [vmem:[%s220 + $0x60] sm:$0xf]
      %v254 = vld [vmem:[%s220 + $0x64] sm:$0xf]
      %v255 = vld [vmem:[%s220 + $0x68] sm:$0xf]
      %v256 = vld [vmem:[%s220 + $0x6c] sm:$0xf]
      %v257 = vld [vmem:[%s220 + $0x70] sm:$0xf]
      %v258 = vld [vmem:[%s220 + $0x74] sm:$0xf]
      %v259 = vld [vmem:[%s220 + $0x78] sm:$0xf]
      %v260 = vld [vmem:[%s220 + $0x7c] sm:$0xf]
      %v261 = vld [vmem:[%s1] sm:$0xf]
      %v262 = vld [vmem:[%s1 + $0x4] sm:$0xf]
      %v263 = vld [vmem:[%s1 + $0x8] sm:$0xf]
      %v264 = vld [vmem:[%s1 + $0xc] sm:$0xf]
      %v265 = vld [vmem:[%s1 + $0x10] sm:$0xf]
      %v266 = vld [vmem:[%s1 + $0x14] sm:$0xf]
      %v267 = vld [vmem:[%s1 + $0x18] sm:$0xf]
      %v268 = vld [vmem:[%s1 + $0x1c] sm:$0xf]
      %v269 = vld [vmem:[%s1 + $0x20] sm:$0xf]
      %v270 = vld [vmem:[%s1 + $0x24] sm:$0xf]
      %v271 = vld [vmem:[%s1 + $0x28] sm:$0xf]
      %v272 = vld [vmem:[%s1 + $0x2c] sm:$0xf]
      %v273 = vld [vmem:[%s1 + $0x30] sm:$0xf]
      %v274 = vld [vmem:[%s1 + $0x34] sm:$0xf]
      %v275 = vld [vmem:[%s1 + $0x38] sm:$0xf]
      %v276 = vld [vmem:[%s1 + $0x3c] sm:$0xf]
      %v277 = vld [vmem:[%s2] sm:$0x1]
      %v279 = vlaneseq
      %v280 = vshrl.u32 %v279, 7
      %v281 = vsub.s32 0, %v280
      %v282 = vrot.slane %v277, %v281
      %v316 = vunpack.c.l.b16 %v229
      %v317 = vunpack.c.l.b16 %v230
      %v318 = vunpack.c.l.b16 %v231
      %v319 = vunpack.c.l.b16 %v232
      %v320 = vunpack.c.l.b16 %v233
      %v321 = vunpack.c.l.b16 %v234
      %v322 = vunpack.c.l.b16 %v235
      %v323 = vunpack.c.l.b16 %v236
      %v324 = vunpack.c.l.b16 %v237
      %v325 = vunpack.c.l.b16 %v238
      %v326 = vunpack.c.l.b16 %v239
      %v327 = vunpack.c.l.b16 %v240
      %v328 = vunpack.c.l.b16 %v241
      %v329 = vunpack.c.l.b16 %v242
      %v330 = vunpack.c.l.b16 %v243
      %v331 = vunpack.c.l.b16 %v244
      %v332 = vunpack.c.l.b16 %v245
      %v333 = vunpack.c.l.b16 %v246
      %v334 = vunpack.c.l.b16 %v247
      %v335 = vunpack.c.l.b16 %v248
      %v336 = vunpack.c.l.b16 %v249
      %v337 = vunpack.c.l.b16 %v250
      %v338 = vunpack.c.l.b16 %v251
      %v339 = vunpack.c.l.b16 %v252
      %v340 = vunpack.c.l.b16 %v253
      %v341 = vunpack.c.l.b16 %v254
      %v342 = vunpack.c.l.b16 %v255
      %v343 = vunpack.c.l.b16 %v256
      %v344 = vunpack.c.l.b16 %v257
      %v345 = vunpack.c.l.b16 %v258
      %v346 = vunpack.c.l.b16 %v259
      %v347 = vunpack.c.l.b16 %v260
      %v348 = vpack.c.b16 %v317, %v316
      %v349 = vpack.c.b16 %v319, %v318
      %v350 = vpack.c.b16 %v321, %v320
      %v351 = vpack.c.b16 %v323, %v322
      %v352 = vpack.c.b16 %v325, %v324
      %v353 = vpack.c.b16 %v327, %v326
      %v354 = vpack.c.b16 %v329, %v328
      %v355 = vpack.c.b16 %v331, %v330
      %v356 = vpack.c.b16 %v333, %v332
      %v357 = vpack.c.b16 %v335, %v334
      %v358 = vpack.c.b16 %v337, %v336
      %v359 = vpack.c.b16 %v339, %v338
      %v360 = vpack.c.b16 %v341, %v340
      %v361 = vpack.c.b16 %v343, %v342
      %v362 = vpack.c.b16 %v345, %v344
      %v363 = vpack.c.b16 %v347, %v346
      %v396 = vunpack.c.l.b16 %v261
      %v397 = vunpack.c.l.b16 %v262
      %v398 = vunpack.c.l.b16 %v263
      %v399 = vunpack.c.l.b16 %v264
      %v400 = vunpack.c.l.b16 %v265
      %v401 = vunpack.c.l.b16 %v266
      %v402 = vunpack.c.l.b16 %v267
      %v403 = vunpack.c.l.b16 %v268
      %v404 = vunpack.c.l.b16 %v269
      %v405 = vunpack.c.l.b16 %v270
      %v406 = vunpack.c.l.b16 %v271
      %v407 = vunpack.c.l.b16 %v272
      %v408 = vunpack.c.l.b16 %v273
      %v409 = vunpack.c.l.b16 %v274
      %v410 = vunpack.c.l.b16 %v275
      %v411 = vunpack.c.l.b16 %v276
      %v412 = vpack.c.b16 %v397, %v396
      %v413 = vpack.c.b16 %v399, %v398
      %v414 = vpack.c.b16 %v401, %v400
      %v415 = vpack.c.b16 %v403, %v402
      %v416 = vpack.c.b16 %v405, %v404
      %v417 = vpack.c.b16 %v407, %v406
      %v418 = vpack.c.b16 %v409, %v408
      %v419 = vpack.c.b16 %v411, %v410
      %428 = vmatprep.subr.bf16.mxu0 0
      %429 = vmatpush1.bf16.msra.mxu0 %v412
      %430 = vmatprep.subr.bf16.mxu0 0
      %431 = vmatpush1.bf16.msra.mxu0 %v413
      %432 = vmatprep.subr.bf16.mxu0 0
      %433 = vmatpush1.bf16.msra.mxu0 %v414
      %434 = vmatprep.subr.bf16.mxu0 0
      %435 = vmatpush1.bf16.msra.mxu0 %v415
      %436 = vmatprep.subr.bf16.mxu0 0
      %437 = vmatpush1.bf16.msra.mxu0 %v416
      %438 = vmatprep.subr.bf16.mxu0 0
      %439 = vmatpush1.bf16.msra.mxu0 %v417
      %440 = vmatprep.subr.bf16.mxu0 0
      %441 = vmatpush1.bf16.msra.mxu0 %v418
      %442 = vmatprep.subr.bf16.mxu0 0
      %443 = vmatpush1.bf16.msra.mxu0 %v419
      %444 = vmatprep.subr.bf16.mxu0 0
      %445 = vmatpush1.bf16.msra.mxu0 0
      %446 = vmatprep.subr.bf16.mxu0 0
      %447 = vmatpush1.bf16.msra.mxu0 0
      %448 = vmatprep.subr.bf16.mxu0 0
      %449 = vmatpush1.bf16.msra.mxu0 0
      %450 = vmatprep.subr.bf16.mxu0 0
      %451 = vmatpush1.bf16.msra.mxu0 0
      %452 = vmatprep.subr.bf16.mxu0 0
      %453 = vmatpush1.bf16.msra.mxu0 0
      %454 = vmatprep.subr.bf16.mxu0 0
      %455 = vmatpush1.bf16.msra.mxu0 0
      %456 = vmatprep.subr.bf16.mxu0 0
      %457 = vmatpush1.bf16.msra.mxu0 0
      %458 = vmatprep.subr.bf16.mxu0 0
      %459 = vmatpush1.bf16.msra.mxu0 0
      %460 = vmatprep.mubr.bf16.mxu0 0
      %461 = vmatmul.mubr.bf16.gmra.mrb[0].mxu0 %v348
      %v462 = vpop.f32.mrb[0].mxu0
      %v463 = vadd.f32 %v282, %v462
      %v464 = vpop.f32.mrb[0].mxu0
      %v465 = vpop.f32.mrb[0].mxu0
      %v466 = vadd.f32 %v282, %v465
      %v467 = vpop.f32.mrb[0].mxu0
      %468 = vmatprep.mubr.bf16.mxu0 0
      %469 = vmatmul.mubr.bf16.gmra.mrb[0].mxu0 %v349
      %v470 = vpop.f32.mrb[0].mxu0
      %v471 = vadd.f32 %v282, %v470
      %v472 = vpop.f32.mrb[0].mxu0
      %v473 = vpop.f32.mrb[0].mxu0
      %v474 = vadd.f32 %v282, %v473
      %v475 = vpop.f32.mrb[0].mxu0
      %476 = vmatprep.mubr.bf16.mxu0 0
      %477 = vmatmul.mubr.bf16.gmra.mrb[0].mxu0 %v350
      %v478 = vpop.f32.mrb[0].mxu0
      %v479 = vadd.f32 %v282, %v478
      %v480 = vpop.f32.mrb[0].mxu0
      %v481 = vpop.f32.mrb[0].mxu0
      %v482 = vadd.f32 %v282, %v481
      %v483 = vpop.f32.mrb[0].mxu0
      %484 = vmatprep.mubr.bf16.mxu0 0
      %485 = vmatmul.mubr.bf16.gmra.mrb[0].mxu0 %v351
      %v486 = vpop.f32.mrb[0].mxu0
      %v487 = vadd.f32 %v282, %v486
      %v488 = vpop.f32.mrb[0].mxu0
      %v489 = vpop.f32.mrb[0].mxu0
      %v490 = vadd.f32 %v282, %v489
      %v491 = vpop.f32.mrb[0].mxu0
      %492 = vmatprep.mubr.bf16.mxu0 0
      %493 = vmatmul.mubr.bf16.gmra.mrb[0].mxu0 %v352
      %v494 = vpop.f32.mrb[0].mxu0
      %v495 = vadd.f32 %v282, %v494
      %v496 = vpop.f32.mrb[0].mxu0
      %v497 = vpop.f32.mrb[0].mxu0
      %v498 = vadd.f32 %v282, %v497
      %v499 = vpop.f32.mrb[0].mxu0
      %500 = vmatprep.mubr.bf16.mxu0 0
      %501 = vmatmul.mubr.bf16.gmra.mrb[0].mxu0 %v353
      %v502 = vpop.f32.mrb[0].mxu0
      %v503 = vadd.f32 %v282, %v502
      %v504 = vpop.f32.mrb[0].mxu0
      %v505 = vpop.f32.mrb[0].mxu0
      %v506 = vadd.f32 %v282, %v505
      %v507 = vpop.f32.mrb[0].mxu0
      %508 = vmatprep.mubr.bf16.mxu0 0
      %509 = vmatmul.mubr.bf16.gmra.mrb[0].mxu0 %v354
      %v510 = vpop.f32.mrb[0].mxu0
      %v511 = vadd.f32 %v282, %v510
      %v512 = vpop.f32.mrb[0].mxu0
      %v513 = vpop.f32.mrb[0].mxu0
      %v514 = vadd.f32 %v282, %v513
      %v515 = vpop.f32.mrb[0].mxu0
      %516 = vmatprep.mubr.bf16.mxu0 0
      %517 = vmatmul.mubr.bf16.gmra.mrb[0].mxu0 %v355
      %v518 = vpop.f32.mrb[0].mxu0
      %v519 = vadd.f32 %v282, %v518
      %v520 = vpop.f32.mrb[0].mxu0
      %v521 = vpop.f32.mrb[0].mxu0
      %v522 = vadd.f32 %v282, %v521
      %v523 = vpop.f32.mrb[0].mxu0
      %524 = vmatprep.mubr.bf16.mxu0 0
      %525 = vmatmul.mubr.bf16.gmra.mrb[0].mxu0 %v356
      %v526 = vpop.f32.mrb[0].mxu0
      %v527 = vadd.f32 %v282, %v526
      %v528 = vpop.f32.mrb[0].mxu0
      %v529 = vpop.f32.mrb[0].mxu0
      %v530 = vadd.f32 %v282, %v529
      %v531 = vpop.f32.mrb[0].mxu0
      %532 = vmatprep.mubr.bf16.mxu0 0
      %533 = vmatmul.mubr.bf16.gmra.mrb[0].mxu0 %v357
      %v534 = vpop.f32.mrb[0].mxu0
      %v535 = vadd.f32 %v282, %v534
      %v536 = vpop.f32.mrb[0].mxu0
      %v537 = vpop.f32.mrb[0].mxu0
      %v538 = vadd.f32 %v282, %v537
      %v539 = vpop.f32.mrb[0].mxu0
      %540 = vmatprep.mubr.bf16.mxu0 0
      %541 = vmatmul.mubr.bf16.gmra.mrb[0].mxu0 %v358
      %v542 = vpop.f32.mrb[0].mxu0
      %v543 = vadd.f32 %v282, %v542
      %v544 = vpop.f32.mrb[0].mxu0
      %v545 = vpop.f32.mrb[0].mxu0
      %v546 = vadd.f32 %v282, %v545
      %v547 = vpop.f32.mrb[0].mxu0
      %548 = vmatprep.mubr.bf16.mxu0 0
      %549 = vmatmul.mubr.bf16.gmra.mrb[0].mxu0 %v359
      %v550 = vpop.f32.mrb[0].mxu0
      %v551 = vadd.f32 %v282, %v550
      %v552 = vpop.f32.mrb[0].mxu0
      %v553 = vpop.f32.mrb[0].mxu0
      %v554 = vadd.f32 %v282, %v553
      %v555 = vpop.f32.mrb[0].mxu0
      %556 = vmatprep.mubr.bf16.mxu0 0
      %557 = vmatmul.mubr.bf16.gmra.mrb[0].mxu0 %v360
      %v558 = vpop.f32.mrb[0].mxu0
      %v559 = vadd.f32 %v282, %v558
      %v560 = vpop.f32.mrb[0].mxu0
      %v561 = vpop.f32.mrb[0].mxu0
      %v562 = vadd.f32 %v282, %v561
      %v563 = vpop.f32.mrb[0].mxu0
      %564 = vmatprep.mubr.bf16.mxu0 0
      %565 = vmatmul.mubr.bf16.gmra.mrb[0].mxu0 %v361
      %v566 = vpop.f32.mrb[0].mxu0
      %v567 = vadd.f32 %v282, %v566
      %v568 = vpop.f32.mrb[0].mxu0
      %v569 = vpop.f32.mrb[0].mxu0
      %v570 = vadd.f32 %v282, %v569
      %v571 = vpop.f32.mrb[0].mxu0
      %572 = vmatprep.mubr.bf16.mxu0 0
      %573 = vmatmul.mubr.bf16.gmra.mrb[0].mxu0 %v362
      %v574 = vpop.f32.mrb[0].mxu0
      %v575 = vadd.f32 %v282, %v574
      %v576 = vpop.f32.mrb[0].mxu0
      %v577 = vpop.f32.mrb[0].mxu0
      %v578 = vadd.f32 %v282, %v577
      %v579 = vpop.f32.mrb[0].mxu0
      %580 = vmatprep.mubr.bf16.mxu0 0
      %581 = vmatmul.mubr.bf16.gmra.mrb[0].mxu0 %v363
      %v582 = vpop.f32.mrb[0].mxu0
      %v583 = vadd.f32 %v282, %v582
      %v584 = vpop.f32.mrb[0].mxu0
      %v585 = vpop.f32.mrb[0].mxu0
      %v586 = vadd.f32 %v282, %v585
      %v587 = vpop.f32.mrb[0].mxu0
      %588 = vdwg.mxu0
      %v589 = vmax.f32 %v463, 0.0
      %v590 = vmax.f32 %v466, 0.0
      %v591 = vmax.f32 %v471, 0.0
      %v592 = vmax.f32 %v474, 0.0
      %v593 = vmax.f32 %v479, 0.0
      %v594 = vmax.f32 %v482, 0.0
      %v595 = vmax.f32 %v487, 0.0
      %v596 = vmax.f32 %v490, 0.0
      %v597 = vmax.f32 %v495, 0.0
      %v598 = vmax.f32 %v498, 0.0
      %v599 = vmax.f32 %v503, 0.0
      %v600 = vmax.f32 %v506, 0.0
      %v601 = vmax.f32 %v511, 0.0
      %v602 = vmax.f32 %v514, 0.0
      %v603 = vmax.f32 %v519, 0.0
      %v604 = vmax.f32 %v522, 0.0
      %v605 = vmax.f32 %v527, 0.0
      %v606 = vmax.f32 %v530, 0.0
      %v607 = vmax.f32 %v535, 0.0
      %v608 = vmax.f32 %v538, 0.0
      %v609 = vmax.f32 %v543, 0.0
      %v610 = vmax.f32 %v546, 0.0
      %v611 = vmax.f32 %v551, 0.0
      %v612 = vmax.f32 %v554, 0.0
      %v613 = vmax.f32 %v559, 0.0
      %v614 = vmax.f32 %v562, 0.0
      %v615 = vmax.f32 %v567, 0.0
      %v616 = vmax.f32 %v570, 0.0
      %v617 = vmax.f32 %v575, 0.0
      %v618 = vmax.f32 %v578, 0.0
      %v619 = vmax.f32 %v583, 0.0
      %v620 = vmax.f32 %v586, 0.0
      %v621 = vpack.c.bf16 %v590, %v589
      %v622 = vpack.c.bf16 %v592, %v591
      %v623 = vpack.c.bf16 %v594, %v593
      %v624 = vpack.c.bf16 %v596, %v595
      %v625 = vpack.c.bf16 %v598, %v597
      %v626 = vpack.c.bf16 %v600, %v599
      %v627 = vpack.c.bf16 %v602, %v601
      %v628 = vpack.c.bf16 %v604, %v603
      %v629 = vpack.c.bf16 %v606, %v605
      %v630 = vpack.c.bf16 %v608, %v607
      %v631 = vpack.c.bf16 %v610, %v609
      %v632 = vpack.c.bf16 %v612, %v611
      %v633 = vpack.c.bf16 %v614, %v613
      %v634 = vpack.c.bf16 %v616, %v615
      %v635 = vpack.c.bf16 %v618, %v617
      %v636 = vpack.c.bf16 %v620, %v619
      %v637 = vld [vmem:[%s3] sm:$0xf]
      %v638 = vld [vmem:[%s3 + $0x4] sm:$0xf]
      %v639 = vld [vmem:[%s3 + $0x8] sm:$0xf]
      %v640 = vld [vmem:[%s3 + $0xc] sm:$0xf]
      %v641 = vld [vmem:[%s4] sm:$0x1]
      %v643 = vlaneseq
      %v644 = vshrl.u32 %v643, 7
      %v645 = vsub.s32 0, %v644
      %v646 = vrot.slane %v641, %v645
      %v652 = vunpack.c.l.b16 %v637
      %v653 = vunpack.c.l.b16 %v638
      %v654 = vunpack.c.l.b16 %v639
      %v655 = vunpack.c.l.b16 %v640
      %v656 = vpack.c.b16 %v653, %v652
      %v657 = vpack.c.b16 %v655, %v654
      %vm660 = vcmask 261120
      %v662 = vsel %vm660, %v621, 0
      %v665 = vsel %vm660, %v622, 0
      %v668 = vsel %vm660, %v623, 0
      %v671 = vsel %vm660, %v624, 0
      %v674 = vsel %vm660, %v625, 0
      %v677 = vsel %vm660, %v626, 0
      %v680 = vsel %vm660, %v627, 0
      %v683 = vsel %vm660, %v628, 0
      %v686 = vsel %vm660, %v629, 0
      %v689 = vsel %vm660, %v630, 0
      %v692 = vsel %vm660, %v631, 0
      %v695 = vsel %vm660, %v632, 0
      %v698 = vsel %vm660, %v633, 0
      %v701 = vsel %vm660, %v634, 0
      %v704 = vsel %vm660, %v635, 0
      %v707 = vsel %vm660, %v636, 0
      %709 = vmatprep.subr.bf16.mxu0 0
      %710 = vmatpush1.bf16.msra.mxu0 %v656
      %711 = vmatprep.subr.bf16.mxu0 0
      %712 = vmatpush1.bf16.msra.mxu0 %v657
      %713 = vmatprep.subr.bf16.mxu0 0
      %714 = vmatpush1.bf16.msra.mxu0 0
      %715 = vmatprep.subr.bf16.mxu0 0
      %716 = vmatpush1.bf16.msra.mxu0 0
      %717 = vmatprep.subr.bf16.mxu0 0
      %718 = vmatpush1.bf16.msra.mxu0 0
      %719 = vmatprep.subr.bf16.mxu0 0
      %720 = vmatpush1.bf16.msra.mxu0 0
      %721 = vmatprep.subr.bf16.mxu0 0
      %722 = vmatpush1.bf16.msra.mxu0 0
      %723 = vmatprep.subr.bf16.mxu0 0
      %724 = vmatpush1.bf16.msra.mxu0 0
      %725 = vmatprep.subr.bf16.mxu0 0
      %726 = vmatpush1.bf16.msra.mxu0 0
      %727 = vmatprep.subr.bf16.mxu0 0
      %728 = vmatpush1.bf16.msra.mxu0 0
      %729 = vmatprep.subr.bf16.mxu0 0
      %730 = vmatpush1.bf16.msra.mxu0 0
      %731 = vmatprep.subr.bf16.mxu0 0
      %732 = vmatpush1.bf16.msra.mxu0 0
      %733 = vmatprep.subr.bf16.mxu0 0
      %734 = vmatpush1.bf16.msra.mxu0 0
      %735 = vmatprep.subr.bf16.mxu0 0
      %736 = vmatpush1.bf16.msra.mxu0 0
      %737 = vmatprep.subr.bf16.mxu0 0
      %738 = vmatpush1.bf16.msra.mxu0 0
      %739 = vmatprep.subr.bf16.mxu0 0
      %740 = vmatpush1.bf16.msra.mxu0 0
      %741 = vmatprep.mubr.bf16.mxu0 0
      %742 = vmatmul.mubr.bf16.gmra.mrb[0].mxu0 %v662
      %v743 = vpop.f32.mrb[0].mxu0
      %v744 = vadd.f32 %v646, %v743
      %v745 = vpop.f32.mrb[0].mxu0
      %v746 = vpop.f32.mrb[0].mxu0
      %v747 = vadd.f32 %v646, %v746
      %v748 = vpop.f32.mrb[0].mxu0
      %749 = vmatprep.mubr.bf16.mxu0 0
      %750 = vmatmul.mubr.bf16.gmra.mrb[0].mxu0 %v665
      %v751 = vpop.f32.mrb[0].mxu0
      %v752 = vadd.f32 %v646, %v751
      %v753 = vpop.f32.mrb[0].mxu0
      %v754 = vpop.f32.mrb[0].mxu0
      %v755 = vadd.f32 %v646, %v754
      %v756 = vpop.f32.mrb[0].mxu0
      %757 = vmatprep.mubr.bf16.mxu0 0
      %758 = vmatmul.mubr.bf16.gmra.mrb[0].mxu0 %v668
      %v759 = vpop.f32.mrb[0].mxu0
      %v760 = vadd.f32 %v646, %v759
      %v761 = vpop.f32.mrb[0].mxu0
      %v762 = vpop.f32.mrb[0].mxu0
      %v763 = vadd.f32 %v646, %v762
      %v764 = vpop.f32.mrb[0].mxu0
      %765 = vmatprep.mubr.bf16.mxu0 0
      %766 = vmatmul.mubr.bf16.gmra.mrb[0].mxu0 %v671
      %v767 = vpop.f32.mrb[0].mxu0
      %v768 = vadd.f32 %v646, %v767
      %v769 = vpop.f32.mrb[0].mxu0
      %v770 = vpop.f32.mrb[0].mxu0
      %v771 = vadd.f32 %v646, %v770
      %v772 = vpop.f32.mrb[0].mxu0
      %773 = vmatprep.mubr.bf16.mxu0 0
      %774 = vmatmul.mubr.bf16.gmra.mrb[0].mxu0 %v674
      %v775 = vpop.f32.mrb[0].mxu0
      %v776 = vadd.f32 %v646, %v775
      %v777 = vpop.f32.mrb[0].mxu0
      %v778 = vpop.f32.mrb[0].mxu0
      %v779 = vadd.f32 %v646, %v778
      %v780 = vpop.f32.mrb[0].mxu0
      %781 = vmatprep.mubr.bf16.mxu0 0
      %782 = vmatmul.mubr.bf16.gmra.mrb[0].mxu0 %v677
      %v783 = vpop.f32.mrb[0].mxu0
      %v784 = vadd.f32 %v646, %v783
      %v785 = vpop.f32.mrb[0].mxu0
      %v786 = vpop.f32.mrb[0].mxu0
      %v787 = vadd.f32 %v646, %v786
      %v788 = vpop.f32.mrb[0].mxu0
      %789 = vmatprep.mubr.bf16.mxu0 0
      %790 = vmatmul.mubr.bf16.gmra.mrb[0].mxu0 %v680
      %v791 = vpop.f32.mrb[0].mxu0
      %v792 = vadd.f32 %v646, %v791
      %v793 = vpop.f32.mrb[0].mxu0
      %v794 = vpop.f32.mrb[0].mxu0
      %v795 = vadd.f32 %v646, %v794
      %v796 = vpop.f32.mrb[0].mxu0
      %797 = vmatprep.mubr.bf16.mxu0 0
      %798 = vmatmul.mubr.bf16.gmra.mrb[0].mxu0 %v683
      %v799 = vpop.f32.mrb[0].mxu0
      %v800 = vadd.f32 %v646, %v799
      %v801 = vpop.f32.mrb[0].mxu0
      %v802 = vpop.f32.mrb[0].mxu0
      %v803 = vadd.f32 %v646, %v802
      %v804 = vpop.f32.mrb[0].mxu0
      %805 = vmatprep.mubr.bf16.mxu0 0
      %806 = vmatmul.mubr.bf16.gmra.mrb[0].mxu0 %v686
      %v807 = vpop.f32.mrb[0].mxu0
      %v808 = vadd.f32 %v646, %v807
      %v809 = vpop.f32.mrb[0].mxu0
      %v810 = vpop.f32.mrb[0].mxu0
      %v811 = vadd.f32 %v646, %v810
      %v812 = vpop.f32.mrb[0].mxu0
      %813 = vmatprep.mubr.bf16.mxu0 0
      %814 = vmatmul.mubr.bf16.gmra.mrb[0].mxu0 %v689
      %v815 = vpop.f32.mrb[0].mxu0
      %v816 = vadd.f32 %v646, %v815
      %v817 = vpop.f32.mrb[0].mxu0
      %v818 = vpop.f32.mrb[0].mxu0
      %v819 = vadd.f32 %v646, %v818
      %v820 = vpop.f32.mrb[0].mxu0
      %821 = vmatprep.mubr.bf16.mxu0 0
      %822 = vmatmul.mubr.bf16.gmra.mrb[0].mxu0 %v692
      %v823 = vpop.f32.mrb[0].mxu0
      %v824 = vadd.f32 %v646, %v823
      %v825 = vpop.f32.mrb[0].mxu0
      %v826 = vpop.f32.mrb[0].mxu0
      %v827 = vadd.f32 %v646, %v826
      %v828 = vpop.f32.mrb[0].mxu0
      %829 = vmatprep.mubr.bf16.mxu0 0
      %830 = vmatmul.mubr.bf16.gmra.mrb[0].mxu0 %v695
      %v831 = vpop.f32.mrb[0].mxu0
      %v832 = vadd.f32 %v646, %v831
      %v833 = vpop.f32.mrb[0].mxu0
      %v834 = vpop.f32.mrb[0].mxu0
      %v835 = vadd.f32 %v646, %v834
      %v836 = vpop.f32.mrb[0].mxu0
      %837 = vmatprep.mubr.bf16.mxu0 0
      %838 = vmatmul.mubr.bf16.gmra.mrb[0].mxu0 %v698
      %v839 = vpop.f32.mrb[0].mxu0
      %v840 = vadd.f32 %v646, %v839
      %v841 = vpop.f32.mrb[0].mxu0
      %v842 = vpop.f32.mrb[0].mxu0
      %v843 = vadd.f32 %v646, %v842
      %v844 = vpop.f32.mrb[0].mxu0
      %845 = vmatprep.mubr.bf16.mxu0 0
      %846 = vmatmul.mubr.bf16.gmra.mrb[0].mxu0 %v701
      %v847 = vpop.f32.mrb[0].mxu0
      %v848 = vadd.f32 %v646, %v847
      %v849 = vpop.f32.mrb[0].mxu0
      %v850 = vpop.f32.mrb[0].mxu0
      %v851 = vadd.f32 %v646, %v850
      %v852 = vpop.f32.mrb[0].mxu0
      %853 = vmatprep.mubr.bf16.mxu0 0
      %854 = vmatmul.mubr.bf16.gmra.mrb[0].mxu0 %v704
      %v855 = vpop.f32.mrb[0].mxu0
      %v856 = vadd.f32 %v646, %v855
      %v857 = vpop.f32.mrb[0].mxu0
      %v858 = vpop.f32.mrb[0].mxu0
      %v859 = vadd.f32 %v646, %v858
      %v860 = vpop.f32.mrb[0].mxu0
      %861 = vmatprep.mubr.bf16.mxu0 0
      %862 = vmatmul.mubr.bf16.gmra.mrb[0].mxu0 %v707
      %v863 = vpop.f32.mrb[0].mxu0
      %v864 = vadd.f32 %v646, %v863
      %v865 = vpop.f32.mrb[0].mxu0
      %v866 = vpop.f32.mrb[0].mxu0
      %v867 = vadd.f32 %v646, %v866
      %v868 = vpop.f32.mrb[0].mxu0
      %869 = vdwg.mxu0
      %v870 = vlaneseq
      %v871 = vand.u32 %v870, 127
      %vm872 = vcmp.ge.s32.totalorder %v871, 8
      %vm873 = vcmp.lt.s32.totalorder %v871, 12
      %vm874 = vmand %vm872, %vm873
      %v875 = vsub.f32 0.0, %v744
      %v876 = vsub.f32 0.0, %v747
      %v877 = vsub.f32 0.0, %v752
      %v878 = vsub.f32 0.0, %v755
      %v879 = vsub.f32 0.0, %v760
      %v880 = vsub.f32 0.0, %v763
      %v881 = vsub.f32 0.0, %v768
      %v882 = vsub.f32 0.0, %v771
      %v883 = vsub.f32 0.0, %v776
      %v884 = vsub.f32 0.0, %v779
      %v885 = vsub.f32 0.0, %v784
      %v886 = vsub.f32 0.0, %v787
      %v887 = vsub.f32 0.0, %v792
      %v888 = vsub.f32 0.0, %v795
      %v889 = vsub.f32 0.0, %v800
      %v890 = vsub.f32 0.0, %v803
      %v891 = vsub.f32 0.0, %v808
      %v892 = vsub.f32 0.0, %v811
      %v893 = vsub.f32 0.0, %v816
      %v894 = vsub.f32 0.0, %v819
      %v895 = vsub.f32 0.0, %v824
      %v896 = vsub.f32 0.0, %v827
      %v897 = vsub.f32 0.0, %v832
      %v898 = vsub.f32 0.0, %v835
      %v899 = vsub.f32 0.0, %v840
      %v900 = vsub.f32 0.0, %v843
      %v901 = vsub.f32 0.0, %v848
      %v902 = vsub.f32 0.0, %v851
      %v903 = vsub.f32 0.0, %v856
      %v904 = vsub.f32 0.0, %v859
      %v905 = vsub.f32 0.0, %v864
      %v906 = vsub.f32 0.0, %v867
      %v907 = vmul.f32 %v875, 1.442695
      %v908 = vpow.pop %v907
      %v909 = vmul.f32 %v876, 1.442695
      %v910 = vpow.pop %v909
      %v911 = vmul.f32 %v877, 1.442695
      %v912 = vpow.pop %v911
      %v913 = vmul.f32 %v878, 1.442695
      %v914 = vpow.pop %v913
      %v915 = vmul.f32 %v879, 1.442695
      %v916 = vpow.pop %v915
      %v917 = vmul.f32 %v880, 1.442695
      %v918 = vpow.pop %v917
      %v919 = vmul.f32 %v881, 1.442695
      %v920 = vpow.pop %v919
      %v921 = vmul.f32 %v882, 1.442695
      %v922 = vpow.pop %v921
      %v923 = vmul.f32 %v883, 1.442695
      %v924 = vpow.pop %v923
      %v925 = vmul.f32 %v884, 1.442695
      %v926 = vpow.pop %v925
      %v927 = vmul.f32 %v885, 1.442695
      %v928 = vpow.pop %v927
      %v929 = vmul.f32 %v886, 1.442695
      %v930 = vpow.pop %v929
      %v931 = vmul.f32 %v887, 1.442695
      %v932 = vpow.pop %v931
      %v933 = vmul.f32 %v888, 1.442695
      %v934 = vpow.pop %v933
      %v935 = vmul.f32 %v889, 1.442695
      %v936 = vpow.pop %v935
      %v937 = vmul.f32 %v890, 1.442695
      %v938 = vpow.pop %v937
      %v939 = vmul.f32 %v891, 1.442695
      %v940 = vpow.pop %v939
      %v941 = vmul.f32 %v892, 1.442695
      %v942 = vpow.pop %v941
      %v943 = vmul.f32 %v893, 1.442695
      %v944 = vpow.pop %v943
      %v945 = vmul.f32 %v894, 1.442695
      %v946 = vpow.pop %v945
      %v947 = vmul.f32 %v895, 1.442695
      %v948 = vpow.pop %v947
      %v949 = vmul.f32 %v896, 1.442695
      %v950 = vpow.pop %v949
      %v951 = vmul.f32 %v897, 1.442695
      %v952 = vpow.pop %v951
      %v953 = vmul.f32 %v898, 1.442695
      %v954 = vpow.pop %v953
      %v955 = vmul.f32 %v899, 1.442695
      %v956 = vpow.pop %v955
      %v957 = vmul.f32 %v900, 1.442695
      %v958 = vpow.pop %v957
      %v959 = vmul.f32 %v901, 1.442695
      %v960 = vpow.pop %v959
      %v961 = vmul.f32 %v902, 1.442695
      %v962 = vpow.pop %v961
      %v963 = vmul.f32 %v903, 1.442695
      %v964 = vpow.pop %v963
      %v965 = vmul.f32 %v904, 1.442695
      %v966 = vpow.pop %v965
      %v967 = vmul.f32 %v905, 1.442695
      %v968 = vpow.pop %v967
      %v969 = vmul.f32 %v906, 1.442695
      %v970 = vpow.pop %v969
      %v971 = vadd.f32 %v908, 1.0
      %v972 = vadd.f32 %v910, 1.0
      %v973 = vadd.f32 %v912, 1.0
      %v974 = vadd.f32 %v914, 1.0
      %v975 = vadd.f32 %v916, 1.0
      %v976 = vadd.f32 %v918, 1.0
      %v977 = vadd.f32 %v920, 1.0
      %v978 = vadd.f32 %v922, 1.0
      %v979 = vadd.f32 %v924, 1.0
      %v980 = vadd.f32 %v926, 1.0
      %v981 = vadd.f32 %v928, 1.0
      %v982 = vadd.f32 %v930, 1.0
      %v983 = vadd.f32 %v932, 1.0
      %v984 = vadd.f32 %v934, 1.0
      %v985 = vadd.f32 %v936, 1.0
      %v986 = vadd.f32 %v938, 1.0
      %v987 = vadd.f32 %v940, 1.0
      %v988 = vadd.f32 %v942, 1.0
      %v989 = vadd.f32 %v944, 1.0
      %v990 = vadd.f32 %v946, 1.0
      %v991 = vadd.f32 %v948, 1.0
      %v992 = vadd.f32 %v950, 1.0
      %v993 = vadd.f32 %v952, 1.0
      %v994 = vadd.f32 %v954, 1.0
      %v995 = vadd.f32 %v956, 1.0
      %v996 = vadd.f32 %v958, 1.0
      %v997 = vadd.f32 %v960, 1.0
      %v998 = vadd.f32 %v962, 1.0
      %v999 = vadd.f32 %v964, 1.0
      %v1000 = vadd.f32 %v966, 1.0
      %v1001 = vadd.f32 %v968, 1.0
      %v1002 = vadd.f32 %v970, 1.0
      %v1003 = vrcp.pop %v971
      %v1004 = vmul.f32 1.0, %v1003
      %v1005 = vrcp.pop %v972
      %v1006 = vmul.f32 1.0, %v1005
      %v1007 = vrcp.pop %v973
      %v1008 = vmul.f32 1.0, %v1007
      %v1009 = vrcp.pop %v974
      %v1010 = vmul.f32 1.0, %v1009
      %v1011 = vrcp.pop %v975
      %v1012 = vmul.f32 1.0, %v1011
      %v1013 = vrcp.pop %v976
      %v1014 = vmul.f32 1.0, %v1013
      %v1015 = vrcp.pop %v977
      %v1016 = vmul.f32 1.0, %v1015
      %v1017 = vrcp.pop %v978
      %v1018 = vmul.f32 1.0, %v1017
      %v1019 = vrcp.pop %v979
      %v1020 = vmul.f32 1.0, %v1019
      %v1021 = vrcp.pop %v980
      %v1022 = vmul.f32 1.0, %v1021
      %v1023 = vrcp.pop %v981
      %v1024 = vmul.f32 1.0, %v1023
      %v1025 = vrcp.pop %v982
      %v1026 = vmul.f32 1.0, %v1025
      %v1027 = vrcp.pop %v983
      %v1028 = vmul.f32 1.0, %v1027
      %v1029 = vrcp.pop %v984
      %v1030 = vmul.f32 1.0, %v1029
      %v1031 = vrcp.pop %v985
      %v1032 = vmul.f32 1.0, %v1031
      %v1033 = vrcp.pop %v986
      %v1034 = vmul.f32 1.0, %v1033
      %v1035 = vrcp.pop %v987
      %v1036 = vmul.f32 1.0, %v1035
      %v1037 = vrcp.pop %v988
      %v1038 = vmul.f32 1.0, %v1037
      %v1039 = vrcp.pop %v989
      %v1040 = vmul.f32 1.0, %v1039
      %v1041 = vrcp.pop %v990
      %v1042 = vmul.f32 1.0, %v1041
      %v1043 = vrcp.pop %v991
      %v1044 = vmul.f32 1.0, %v1043
      %v1045 = vrcp.pop %v992
      %v1046 = vmul.f32 1.0, %v1045
      %v1047 = vrcp.pop %v993
      %v1048 = vmul.f32 1.0, %v1047
      %v1049 = vrcp.pop %v994
      %v1050 = vmul.f32 1.0, %v1049
      %v1051 = vrcp.pop %v995
      %v1052 = vmul.f32 1.0, %v1051
      %v1053 = vrcp.pop %v996
      %v1054 = vmul.f32 1.0, %v1053
      %v1055 = vrcp.pop %v997
      %v1056 = vmul.f32 1.0, %v1055
      %v1057 = vrcp.pop %v998
      %v1058 = vmul.f32 1.0, %v1057
      %v1059 = vrcp.pop %v999
      %v1060 = vmul.f32 1.0, %v1059
      %v1061 = vrcp.pop %v1000
      %v1062 = vmul.f32 1.0, %v1061
      %v1063 = vrcp.pop %v1001
      %v1064 = vmul.f32 1.0, %v1063
      %v1065 = vrcp.pop %v1002
      %v1066 = vmul.f32 1.0, %v1065
      %v1067 = vsel %vm874, %v1004, %v744
      %v1068 = vsel %vm874, %v1006, %v747
      %v1069 = vsel %vm874, %v1008, %v752
      %v1070 = vsel %vm874, %v1010, %v755
      %v1071 = vsel %vm874, %v1012, %v760
      %v1072 = vsel %vm874, %v1014, %v763
      %v1073 = vsel %vm874, %v1016, %v768
      %v1074 = vsel %vm874, %v1018, %v771
      %v1075 = vsel %vm874, %v1020, %v776
      %v1076 = vsel %vm874, %v1022, %v779
      %v1077 = vsel %vm874, %v1024, %v784
      %v1078 = vsel %vm874, %v1026, %v787
      %v1079 = vsel %vm874, %v1028, %v792
      %v1080 = vsel %vm874, %v1030, %v795
      %v1081 = vsel %vm874, %v1032, %v800
      %v1082 = vsel %vm874, %v1034, %v803
      %v1083 = vsel %vm874, %v1036, %v808
      %v1084 = vsel %vm874, %v1038, %v811
      %v1085 = vsel %vm874, %v1040, %v816
      %v1086 = vsel %vm874, %v1042, %v819
      %v1087 = vsel %vm874, %v1044, %v824
      %v1088 = vsel %vm874, %v1046, %v827
      %v1089 = vsel %vm874, %v1048, %v832
      %v1090 = vsel %vm874, %v1050, %v835
      %v1091 = vsel %vm874, %v1052, %v840
      %v1092 = vsel %vm874, %v1054, %v843
      %v1093 = vsel %vm874, %v1056, %v848
      %v1094 = vsel %vm874, %v1058, %v851
      %v1095 = vsel %vm874, %v1060, %v856
      %v1096 = vsel %vm874, %v1062, %v859
      %v1097 = vsel %vm874, %v1064, %v864
      %v1098 = vsel %vm874, %v1066, %v867
      %1099 = vst [vmem:[%s226] sm:$0xff] %v1067
      %1100 = vst [vmem:[%s226 + $0x8] sm:$0xff] %v1068
      %1101 = vst [vmem:[%s226 + $0x10] sm:$0xff] %v1069
      %1102 = vst [vmem:[%s226 + $0x18] sm:$0xff] %v1070
      %1103 = vst [vmem:[%s226 + $0x20] sm:$0xff] %v1071
      %1104 = vst [vmem:[%s226 + $0x28] sm:$0xff] %v1072
      %1105 = vst [vmem:[%s226 + $0x30] sm:$0xff] %v1073
      %1106 = vst [vmem:[%s226 + $0x38] sm:$0xff] %v1074
      %1107 = vst [vmem:[%s226 + $0x40] sm:$0xff] %v1075
      %1108 = vst [vmem:[%s226 + $0x48] sm:$0xff] %v1076
      %1109 = vst [vmem:[%s226 + $0x50] sm:$0xff] %v1077
      %1110 = vst [vmem:[%s226 + $0x58] sm:$0xff] %v1078
      %1111 = vst [vmem:[%s226 + $0x60] sm:$0xff] %v1079
      %1112 = vst [vmem:[%s226 + $0x68] sm:$0xff] %v1080
      %1113 = vst [vmem:[%s226 + $0x70] sm:$0xff] %v1081
      %1114 = vst [vmem:[%s226 + $0x78] sm:$0xff] %v1082
      %1115 = vst [vmem:[%s226 + $0x80] sm:$0xff] %v1083
      %1116 = vst [vmem:[%s226 + $0x88] sm:$0xff] %v1084
      %1117 = vst [vmem:[%s226 + $0x90] sm:$0xff] %v1085
      %1118 = vst [vmem:[%s226 + $0x98] sm:$0xff] %v1086
      %1119 = vst [vmem:[%s226 + $0xa0] sm:$0xff] %v1087
      %1120 = vst [vmem:[%s226 + $0xa8] sm:$0xff] %v1088
      %1121 = vst [vmem:[%s226 + $0xb0] sm:$0xff] %v1089
      %1122 = vst [vmem:[%s226 + $0xb8] sm:$0xff] %v1090
      %1123 = vst [vmem:[%s226 + $0xc0] sm:$0xff] %v1091
      %1124 = vst [vmem:[%s226 + $0xc8] sm:$0xff] %v1092
      %1125 = vst [vmem:[%s226 + $0xd0] sm:$0xff] %v1093
      %1126 = vst [vmem:[%s226 + $0xd8] sm:$0xff] %v1094
      %1127 = vst [vmem:[%s226 + $0xe0] sm:$0xff] %v1095
      %1128 = vst [vmem:[%s226 + $0xe8] sm:$0xff] %v1096
      %1129 = vst [vmem:[%s226 + $0xf0] sm:$0xff] %v1097
      %1130 = vst [vmem:[%s226 + $0xf8] sm:$0xff] %v1098
      %s1131 = smul.u32 32, %s16
      %p1132 = scmp.lt.s32.totalorder %s1131, 63
      %s1133 = scalar_select %p1132, %s1131, 63
      %s1134 = smul.addr %s1133, 8
      %s1135 = scalar_lea.vmem %s5, %s1134
      // Predicated region
      $region41: #{quant_retinaface_forward.1} parent=39 // pred_check
        %p1136 = pneg %p144
      $region42: #{quant_retinaface_forward.1} parent=39 // pred_check_branch
        %1138 = sbr.rel (%p1136) target = $region44
      $region43: #{quant_retinaface_forward.1} parent=39 // pred_region
        %s1139 = smul.u32 32, %s16
      $region44: #{quant_retinaface_forward.1} parent=39 // pred_fallthru
        _
    $region40: #{quant_retinaface_forward.1} parent=5 // pred_fallthru
      _
    %p1140 = scmp.le.s32.totalorder 2, %s11
    // Predicated region
    $region45: #{quant_retinaface_forward.1} parent=5 // pred_check
      %p1141 = pneg %p1140
    $region46: #{quant_retinaface_forward.1} parent=5 // pred_check_branch
      %1143 = sbr.rel (%p1141) target = $region48
    $region47: #{quant_retinaface_forward.1} parent=5 // pred_region
      %s1144 = ssub.s32 %s11, 2
      // Predicated region
      $region49: #{quant_retinaface_forward.1} parent=47 // pred_check
        %p1145 = pneg %p150
      $region50: #{quant_retinaface_forward.1} parent=47 // pred_check_branch
        %1147 = sbr.rel (%p1145) target = $region52
      $region51: #{quant_retinaface_forward.1} parent=47 // pred_region
        %s1148 = smul.u32 32, %s17
        %p1149 = scmp.lt.s32.totalorder %s1148, 63
        %s1150 = scalar_select %p1149, %s1148, 63
        %s1151 = smul.addr %s1150, 8
        %s1152 = scalar_lea.vmem %s5, %s1151
      $region52: #{quant_retinaface_forward.1} parent=47 // pred_fallthru
        _
    $region48: #{quant_retinaface_forward.1} parent=5 // pred_fallthru
      _
  $region6: #{quant_retinaface_forward.1} parent=0 // loop_footer
    %s15 = sadd.s32 1, %s11
  $region7: #{quant_retinaface_forward.1} parent=0 // loop_footer_branch
    %10 = sbr.rel target = $region3
  $region8: #{quant_retinaface_forward.1} parent=0 // loop_exit
    _

</llo_original>
